<compile_context>
chip_gen: v5e
topology: v5e:2x2
jax: 0.10.0
libtpu: 0.0.40
codegen_flags: <defaults>
</compile_context>

<pallas_src>
import jax
import jax.numpy as jnp
from jax.experimental import pallas as pl
from jax.experimental.pallas import tpu as pltpu


def _round_up(x, k):
    return (x + k - 1) // k * k


def _choose_tiling(n, m):
    """Pick (n_pad, tile_n): blocks satisfy the (8,128) rule and fit VMEM."""
    n8 = _round_up(n, 8)
    # Conservative budget for the double-buffered keys+values blocks:
    #   2 arrays x 2 pipeline buffers x tile_n x m x 4 B
    # 16 MiB leaves headroom even for v7x (64 MiB VMEM, 32 MiB scoped default).
    budget = 16 * 1024 * 1024
    rows_fit = budget // (2 * 2 * m * 4)
    if n8 <= rows_fit or rows_fit < 128:
        # Single full-size tile (also the fallback for extremely wide m where a
        # lane-dense 128-row tile would not fit the budget).
        return n8, n8
    tile_n = min(1024, (rows_fit // 128) * 128)  # multiple of 128 -> lane-dense out block
    return _round_up(n, tile_n), tile_n


def _nw_kernel(c_ref, q_ref, k_ref, v_ref, o_ref):
    # c_ref: SMEM (1,) holding -0.5 * w**2
    # q_ref: (tile_n, 1) queries column (broadcast across lanes)
    # k_ref, v_ref: (tile_n, m)
    # o_ref: (1, tile_n) lane-dense output slab
    c = c_ref[0]
    d = q_ref[...] - k_ref[...]                 # (tile_n, m)
    logits = (d * d) * c                        # == -((q-k)*w)^2 / 2, always <= 0

    # numerically-stable row softmax, normalized after the reductions
    row_max = jnp.max(logits, axis=1, keepdims=True)
    e = jnp.exp(logits - row_max)               # (tile_n, m)
    num = jnp.sum(e * v_ref[...], axis=1)       # (tile_n,)
    den = jnp.sum(e, axis=1)                    # (tile_n,)  >= 1 after max-subtraction
    # approx=False keeps the 1e-5 comparison against the reference tight; the
    # reciprocal only touches tile_n elements so it is cheap either way.
    o_ref[...] = (num * pl.reciprocal(den, approx=False)).reshape(1, -1)


def nw_kernel_regression(queries, keys, values, w):
    """queries: (n,), keys/values: (n, m), w: scalar -> (n,)"""
    n, m = keys.shape
    n_pad, tile_n = _choose_tiling(n, m)
    pad = n_pad - n

    q2 = queries.reshape(n, 1).astype(jnp.float32)
    k2 = keys.astype(jnp.float32)
    v2 = values.astype(jnp.float32)
    if pad:
        # zero-padded rows produce finite garbage (value 0) that is sliced off below
        q2 = jnp.pad(q2, ((0, pad), (0, 0)))
        k2 = jnp.pad(k2, ((0, pad), (0, 0)))
        v2 = jnp.pad(v2, ((0, pad), (0, 0)))

    # fold the parameter: -((q-k)*w)^2 / 2 == (q-k)^2 * (-0.5 * w^2)
    c = (-0.5 * jnp.asarray(w, jnp.float32) ** 2).reshape(1)

    out = pl.pallas_call(
        _nw_kernel,
        out_shape=jax.ShapeDtypeStruct((1, n_pad), jnp.float32),
        grid=(n_pad // tile_n,),
        in_specs=[
            pl.BlockSpec(memory_space=pltpu.MemorySpace.SMEM),   # c (scalar)
            pl.BlockSpec((tile_n, 1), lambda i: (i, 0)),         # queries column
            pl.BlockSpec((tile_n, m), lambda i: (i, 0)),         # keys
            pl.BlockSpec((tile_n, m), lambda i: (i, 0)),         # values
        ],
        out_specs=pl.BlockSpec((1, tile_n), lambda i: (0, i)),
        compiler_params=pltpu.CompilerParams(
            dimension_semantics=("parallel",)),
    )(c, q2, k2, v2)
    return out.reshape(-1)[:n]


def f(x):
    return 2.0 * jnp.sin(x) + x ** 0.8


def reference(queries, keys, values, w):
    n, m = keys.shape
    q = jnp.repeat(queries, m).reshape(n, m)
    logits = -((q - keys) * w) ** 2 / 2.0
    attn = jax.nn.softmax(logits, axis=1)
    return jnp.sum(attn * values, axis=1)


if __name__ == "__main__":
    n_train = 50
    key = jax.random.PRNGKey(0)
    k_x, k_noise, k_w = jax.random.split(key, 3)

    # deterministic synthetic "training" data, mirroring the module's setup
    x_train = jnp.sort(jax.random.uniform(k_x, (n_train,), jnp.float32) * 5.0)
    y_train = f(x_train) + 0.5 * jax.random.normal(k_noise, (n_train,), jnp.float32)

    # build keys/values by excluding the diagonal (each row drops its own sample)
    mask = ~jnp.eye(n_train, dtype=bool)
    X_tile = jnp.tile(x_train, (n_train, 1))
    Y_tile = jnp.tile(y_train, (n_train, 1))
    keys_arr = X_tile[mask].reshape(n_train, n_train - 1)
    values_arr = Y_tile[mask].reshape(n_train, n_train - 1)

    # deterministic parameter init (nn.Parameter(torch.rand((1,))))
    w = jax.random.uniform(k_w, (1,), jnp.float32)[0]

    queries = x_train  # predict at the training points

    out = nw_kernel_regression(queries, keys_arr, values_arr, w)
    out = jax.block_until_ready(out)

    ref = reference(queries, keys_arr, values_arr, w)
    assert out.shape == (n_train,)
    assert jnp.allclose(out, ref, atol=1e-5, rtol=1e-5), (out, ref)

    print("KERNEL_OK")
</pallas_src>

<mosaic_0001>
module attributes {stable_mosaic.version = 11 : i64} {
  func.func @_nw_kernel(%arg0: i32, %arg1: memref<1xf32, #tpu.memory_space<smem>>, %arg2: memref<56x1xf32, #tpu.memory_space<vmem>>, %arg3: memref<56x49xf32, #tpu.memory_space<vmem>>, %arg4: memref<56x49xf32, #tpu.memory_space<vmem>>, %arg5: memref<1x56xf32, #tpu.memory_space<vmem>>) attributes {dimension_semantics = [#tpu.dimension_semantics<parallel>], iteration_bounds = array<i64: 1>, scalar_prefetch = 0 : i64, scratch_operands = 0 : i64, tpu.core_type = #tpu.core_type<tc>, window_params = [{transform_indices = @transform_0, window_bounds = array<i64: 1>}, {transform_indices = @transform_1, window_bounds = array<i64: 56, 1>}, {transform_indices = @transform_2, window_bounds = array<i64: 56, 49>}, {transform_indices = @transform_3, window_bounds = array<i64: 56, 49>}, {transform_indices = @transform_4, window_bounds = array<i64: 1, 56>}]} {
    %c0 = arith.constant 0 : index
    %0 = memref.load %arg1[%c0] : memref<1xf32, #tpu.memory_space<smem>>
    %c0_0 = arith.constant 0 : index
    %c0_1 = arith.constant 0 : index
    %1 = vector.load %arg2[%c0_0, %c0_1] : memref<56x1xf32, #tpu.memory_space<vmem>>, vector<56x1xf32>
    %c0_2 = arith.constant 0 : index
    %c0_3 = arith.constant 0 : index
    %2 = vector.load %arg3[%c0_2, %c0_3] : memref<56x49xf32, #tpu.memory_space<vmem>>, vector<56x49xf32>
    %3 = vector.broadcast %1 : vector<56x1xf32> to vector<56x49xf32>
    %4 = arith.subf %3, %2 : vector<56x49xf32>
    %5 = arith.mulf %4, %4 : vector<56x49xf32>
    %6 = vector.broadcast %0 : f32 to vector<56x49xf32>
    %7 = arith.mulf %5, %6 : vector<56x49xf32>
    %cst = arith.constant dense<0xFF800000> : vector<56xf32>
    %8 = vector.multi_reduction <maximumf>, %7, %cst [1] : vector<56x49xf32> to vector<56xf32>
    %9 = vector.shape_cast %8 : vector<56xf32> to vector<56x1xf32>
    %10 = vector.broadcast %9 : vector<56x1xf32> to vector<56x49xf32>
    %11 = arith.subf %7, %10 : vector<56x49xf32>
    %12 = math.exp %11 : vector<56x49xf32>
    %c0_4 = arith.constant 0 : index
    %c0_5 = arith.constant 0 : index
    %13 = vector.load %arg4[%c0_4, %c0_5] : memref<56x49xf32, #tpu.memory_space<vmem>>, vector<56x49xf32>
    %14 = arith.mulf %12, %13 : vector<56x49xf32>
    %cst_6 = arith.constant dense<0.000000e+00> : vector<56xf32>
    %15 = vector.multi_reduction <add>, %14, %cst_6 [1] : vector<56x49xf32> to vector<56xf32>
    %cst_7 = arith.constant dense<0.000000e+00> : vector<56xf32>
    %16 = vector.multi_reduction <add>, %12, %cst_7 [1] : vector<56x49xf32> to vector<56xf32>
    %17 = tpu.reciprocal %16 : vector<56xf32> -> vector<56xf32>
    %18 = arith.mulf %15, %17 : vector<56xf32>
    %19 = vector.shape_cast %18 : vector<56xf32> to vector<1x56xf32>
    %c0_8 = arith.constant 0 : index
    %c0_9 = arith.constant 0 : index
    %20 = vector.load %arg5[%c0_8, %c0_9] : memref<1x56xf32, #tpu.memory_space<vmem>>, vector<1x56xf32>
    tpu.vector_store %arg5[%c0_8, %c0_9], %19 {strides = array<i32>} : memref<1x56xf32, #tpu.memory_space<vmem>>, vector<1x56xf32>,
    return
  }
  func.func @transform_0(%arg0: i32) -> i32 {
    %c0_i32 = arith.constant 0 : i32
    %c0_i32_0 = arith.constant 0 : i32
    return %c0_i32 : i32
  }
  func.func @transform_1(%arg0: i32) -> (i32, i32) {
    %c0_i32 = arith.constant 0 : i32
    %c0_i32_0 = arith.constant 0 : i32
    return %arg0, %c0_i32 : i32, i32
  }
  func.func @transform_2(%arg0: i32) -> (i32, i32) {
    %c0_i32 = arith.constant 0 : i32
    %c0_i32_0 = arith.constant 0 : i32
    return %arg0, %c0_i32 : i32, i32
  }
  func.func @transform_3(%arg0: i32) -> (i32, i32) {
    %c0_i32 = arith.constant 0 : i32
    %c0_i32_0 = arith.constant 0 : i32
    return %arg0, %c0_i32 : i32, i32
  }
  func.func @transform_4(%arg0: i32) -> (i32, i32) {
    %c0_i32 = arith.constant 0 : i32
    %c0_i32_0 = arith.constant 0 : i32
    return %c0_i32, %arg0 : i32, i32
  }
}

</mosaic_0001>

<llo_original>
// kernel: tpu_custom_call.1
$region0: #{tpu_custom_call.1}
  #allocation0 [shape = 'u32[]', space=smem, size = 0x4, offset = 0x4, fixed_abs, tag = 'smem constant byte address 0x4 - core index']
  #allocation1 [shape = 'u32[72,128]{1,0:T(1,128)}', space=vmem, size = 0x9000, scoped, tag = 'internal scratch']
  #allocation2 [shape = 'f32[1]{0:T(128)S(6)}', space=smem, size = 0x200, scoped, tag = 'scoped memory for tpu_custom_call.1']
  %s0 = inlined_call_operand.<no memory space> [shape: f32[1], index: 0, kind: input, shape index: {}]
  %s1 = inlined_call_operand.vmem [shape: f32[56,1], index: 1, kind: input, shape index: {}]
  %s2 = inlined_call_operand.vmem [shape: f32[56,49], index: 2, kind: input, shape index: {}]
  %s3 = inlined_call_operand.hbm [shape: f32[56,49], index: 3, kind: input, shape index: {}]
  %s4 = inlined_call_operand.hbm [shape: f32[1,56], index: 4, kind: output, shape index: {}]
  %s5 = sld [smem:[#allocation0]]
  $region30: #{tpu_custom_call.1} parent=0
    _
  %s7 = ssub.s32 1, %s5
  %s8 = scalar_select 0, %s7, %s5
  %9 = sst [smem:[#allocation2]] %s0
  $region1: #{tpu_custom_call.1} parent=0
    #allocation3 [shape = 'u8[28672]{0}', space=vmem, size = 0x7000, scoped, tag = 'input window, operand 3, single buffered']
    #allocation4 [shape = 's32[1]{0}', space=sflag, size = 0x4, scoped, tag = 'scoped memory for tpu_custom_call.1']
    #allocation5 [shape = 's32[1]{0}', space=sflag, size = 0x4, scoped, tag = 'scoped memory for tpu_custom_call.1']
    #allocation6 [shape = 'u8[512]{0}', space=vmem, size = 0x400, scoped, tag = 'output window, operand 0, single buffered']
    %10 = vsyncpa [#allocation4], 0
    %11 = vsyncpa [#allocation5], 0
    // Predicated region
    $region2: #{tpu_custom_call.1} parent=1 // pred_check
      _
    $region3: #{tpu_custom_call.1} parent=1 // pred_check_branch
      %13 = sbr.rel (0) target = $region5
    $region4: #{tpu_custom_call.1} parent=1 // pred_region
      _
    $region5: #{tpu_custom_call.1} parent=1 // pred_fallthru
      _
    // Predicated region
    $region6: #{tpu_custom_call.1} parent=1 // pred_check
      _
    $region7: #{tpu_custom_call.1} parent=1 // pred_check_branch
      %15 = sbr.rel (0) target = $region9
    $region8: #{tpu_custom_call.1} parent=1 // pred_region
      _
    $region9: #{tpu_custom_call.1} parent=1 // pred_fallthru
      _
    // Predicated region
    $region10: #{tpu_custom_call.1} parent=1 // pred_check
      _
    $region11: #{tpu_custom_call.1} parent=1 // pred_check_branch
      %17 = sbr.rel (0) target = $region13
    $region12: #{tpu_custom_call.1} parent=1 // pred_region
      _
    $region13: #{tpu_custom_call.1} parent=1 // pred_fallthru
      _
    // Predicated region
    $region14: #{tpu_custom_call.1} parent=1 // pred_check
      _
    $region15: #{tpu_custom_call.1} parent=1 // pred_check_branch
      %19 = sbr.rel (0) target = $region17
    $region16: #{tpu_custom_call.1} parent=1 // pred_region
      %21 = vsyncadd [#allocation4], 0
      %s22 = sshll.u32 %s3, 4
      %s23 = int_to_ptr.hbm [resolvable:$true] %s22
      %s24 = sshll.u32 [#allocation3], 4
      %s25 = int_to_ptr.vmem [resolvable:$true] %s24
      %30 = dma.hbm_to_vmem [thread:$0]  %s23, 896, %s25, [#allocation4], 128, 128, 8
    $region17: #{tpu_custom_call.1} parent=1 // pred_fallthru
      _
    // Predicated region
    $region18: #{tpu_custom_call.1} parent=1 // pred_check
      _
    $region19: #{tpu_custom_call.1} parent=1 // pred_check_branch
      %32 = sbr.rel (0) target = $region21
    $region20: #{tpu_custom_call.1} parent=1 // pred_region
      %34 = dma.done [#allocation4], 896
    $region21: #{tpu_custom_call.1} parent=1 // pred_fallthru
      _
    %s35 = sld [smem:[#allocation2]]
    %v36 = vld [vmem:[%s1] sm:$0xff]
    %v37 = vld [vmem:[%s1 + $0x8] sm:$0xff]
    %v38 = vld [vmem:[%s1 + $0x10] sm:$0xff]
    %v39 = vld [vmem:[%s1 + $0x18] sm:$0xff]
    %v40 = vld [vmem:[%s1 + $0x20] sm:$0xff]
    %v41 = vld [vmem:[%s1 + $0x28] sm:$0xff]
    %v42 = vld [vmem:[%s1 + $0x30] sm:$0xff]
    %v43 = vld [vmem:[%s2] sm:$0xff]
    %v44 = vld [vmem:[%s2 + $0x8] sm:$0xff]
    %v45 = vld [vmem:[%s2 + $0x10] sm:$0xff]
    %v46 = vld [vmem:[%s2 + $0x18] sm:$0xff]
    %v47 = vld [vmem:[%s2 + $0x20] sm:$0xff]
    %v48 = vld [vmem:[%s2 + $0x28] sm:$0xff]
    %v49 = vld [vmem:[%s2 + $0x30] sm:$0xff]
    %51 = vset.pattern.permute.xlu0 0
    %52 = vperm.xlu0 %51, %v36
    %v53 = vpop.permute.xlu0 %52
    %56 = vset.pattern.permute.xlu0 0
    %57 = vperm.xlu0 %56, %v37
    %v58 = vpop.permute.xlu0 %57
    %61 = vset.pattern.permute.xlu0 0
    %62 = vperm.xlu0 %61, %v38
    %v63 = vpop.permute.xlu0 %62
    %66 = vset.pattern.permute.xlu0 0
    %67 = vperm.xlu0 %66, %v39
    %v68 = vpop.permute.xlu0 %67
    %71 = vset.pattern.permute.xlu0 0
    %72 = vperm.xlu0 %71, %v40
    %v73 = vpop.permute.xlu0 %72
    %76 = vset.pattern.permute.xlu0 0
    %77 = vperm.xlu0 %76, %v41
    %v78 = vpop.permute.xlu0 %77
    %81 = vset.pattern.permute.xlu0 0
    %82 = vperm.xlu0 %81, %v42
    %v83 = vpop.permute.xlu0 %82
    %v85 = vsub.f32 %v53, %v43
    %v86 = vsub.f32 %v58, %v44
    %v87 = vsub.f32 %v63, %v45
    %v88 = vsub.f32 %v68, %v46
    %v89 = vsub.f32 %v73, %v47
    %v90 = vsub.f32 %v78, %v48
    %v91 = vsub.f32 %v83, %v49
    %v92 = vmul.f32 %v85, %v85
    %v93 = vmul.f32 %v86, %v86
    %v94 = vmul.f32 %v87, %v87
    %v95 = vmul.f32 %v88, %v88
    %v96 = vmul.f32 %v89, %v89
    %v97 = vmul.f32 %v90, %v90
    %v98 = vmul.f32 %v91, %v91
    %v99 = vstv %s35
    %v100 = vmul.f32 %v92, %v99
    %v101 = vmul.f32 %v93, %v99
    %v102 = vmul.f32 %v94, %v99
    %v103 = vmul.f32 %v95, %v99
    %v104 = vmul.f32 %v96, %v99
    %v105 = vmul.f32 %v97, %v99
    %v106 = vmul.f32 %v98, %v99
    %vm107 = vcmask 400384
    %v108 = vsel %vm107, %v100, -inf
    %109 = vmax.xlane.f32.xlu0 %v108
    %v110 = vpop.xlane.xlu0 %109
    %v111 = vsel %vm107, %v101, -inf
    %112 = vmax.xlane.f32.xlu0 %v111
    %v113 = vpop.xlane.xlu0 %112
    %v114 = vsel %vm107, %v102, -inf
    %115 = vmax.xlane.f32.xlu0 %v114
    %v116 = vpop.xlane.xlu0 %115
    %v117 = vsel %vm107, %v103, -inf
    %118 = vmax.xlane.f32.xlu0 %v117
    %v119 = vpop.xlane.xlu0 %118
    %v120 = vsel %vm107, %v104, -inf
    %121 = vmax.xlane.f32.xlu0 %v120
    %v122 = vpop.xlane.xlu0 %121
    %v123 = vsel %vm107, %v105, -inf
    %124 = vmax.xlane.f32.xlu0 %v123
    %v125 = vpop.xlane.xlu0 %124
    %v126 = vsel %vm107, %v106, -inf
    %127 = vmax.xlane.f32.xlu0 %v126
    %v128 = vpop.xlane.xlu0 %127
    %v129 = vsub.f32 %v100, %v110
    %v130 = vsub.f32 %v101, %v113
    %v131 = vsub.f32 %v102, %v116
    %v132 = vsub.f32 %v103, %v119
    %v133 = vsub.f32 %v104, %v122
    %v134 = vsub.f32 %v105, %v125
    %v135 = vsub.f32 %v106, %v128
    %v136 = vmul.f32 %v129, 1.442695
    %v137 = vpow.pop %v136
    %v138 = vmul.f32 %v130, 1.442695
    %v139 = vpow.pop %v138
    %v140 = vmul.f32 %v131, 1.442695
    %v141 = vpow.pop %v140
    %v142 = vmul.f32 %v132, 1.442695
    %v143 = vpow.pop %v142
    %v144 = vmul.f32 %v133, 1.442695
    %v145 = vpow.pop %v144
    %v146 = vmul.f32 %v134, 1.442695
    %v147 = vpow.pop %v146
    %v148 = vmul.f32 %v135, 1.442695
    %v149 = vpow.pop %v148
    %v150 = vld [vmem:[#allocation3] sm:$0xff]
    %v151 = vld [vmem:[#allocation3 + $0x8] sm:$0xff]
    %v152 = vld [vmem:[#allocation3 + $0x10] sm:$0xff]
    %v153 = vld [vmem:[#allocation3 + $0x18] sm:$0xff]
    %v154 = vld [vmem:[#allocation3 + $0x20] sm:$0xff]
    %v155 = vld [vmem:[#allocation3 + $0x28] sm:$0xff]
    %v156 = vld [vmem:[#allocation3 + $0x30] sm:$0xff]
    %v157 = vmul.f32 %v137, %v150
    %v158 = vmul.f32 %v139, %v151
    %v159 = vmul.f32 %v141, %v152
    %v160 = vmul.f32 %v143, %v153
    %v161 = vmul.f32 %v145, %v154
    %v162 = vmul.f32 %v147, %v155
    %v163 = vmul.f32 %v149, %v156
    %v164 = vsel %vm107, %v157, 0.0
    %165 = vadd.xlane.f32.xlu0 %v164
    %v166 = vpop.xlane.xlu0 %165
    %v167 = vsel %vm107, %v158, 0.0
    %168 = vadd.xlane.f32.xlu0 %v167
    %v169 = vpop.xlane.xlu0 %168
    %v170 = vsel %vm107, %v159, 0.0
    %171 = vadd.xlane.f32.xlu0 %v170
    %v172 = vpop.xlane.xlu0 %171
    %v173 = vsel %vm107, %v160, 0.0
    %174 = vadd.xlane.f32.xlu0 %v173
    %v175 = vpop.xlane.xlu0 %174
    %v176 = vsel %vm107, %v161, 0.0
    %177 = vadd.xlane.f32.xlu0 %v176
    %v178 = vpop.xlane.xlu0 %177
    %v179 = vsel %vm107, %v162, 0.0
    %180 = vadd.xlane.f32.xlu0 %v179
    %v181 = vpop.xlane.xlu0 %180
    %v182 = vsel %vm107, %v163, 0.0
    %183 = vadd.xlane.f32.xlu0 %v182
    %v184 = vpop.xlane.xlu0 %183
    %v185 = vsel %vm107, %v137, 0.0
    %186 = vadd.xlane.f32.xlu0 %v185
    %v187 = vpop.xlane.xlu0 %186
    %v188 = vsel %vm107, %v139, 0.0
    %189 = vadd.xlane.f32.xlu0 %v188
    %v190 = vpop.xlane.xlu0 %189
    %v191 = vsel %vm107, %v141, 0.0
    %192 = vadd.xlane.f32.xlu0 %v191
    %v193 = vpop.xlane.xlu0 %192
    %v194 = vsel %vm107, %v143, 0.0
    %195 = vadd.xlane.f32.xlu0 %v194
    %v196 = vpop.xlane.xlu0 %195
    %v197 = vsel %vm107, %v145, 0.0
    %198 = vadd.xlane.f32.xlu0 %v197
    %v199 = vpop.xlane.xlu0 %198
    %v200 = vsel %vm107, %v147, 0.0
    %201 = vadd.xlane.f32.xlu0 %v200
    %v202 = vpop.xlane.xlu0 %201
    %v203 = vsel %vm107, %v149, 0.0
    %204 = vadd.xlane.f32.xlu0 %v203
    %v205 = vpop.xlane.xlu0 %204
    %v206 = vrcp.pop %v187
    %v207 = vmul.f32 %v187, %v206
    %v208 = vsub.f32 1.0, %v207
    %v209 = vmul.f32 %v206, %v208
    %v210 = vadd.f32 %v206, %v209
    %vm211 = vweird.f32 %v187
    %vm212 = vweird.f32 %v206
    %vm213 = vmor %vm211, %vm212
    %v214 = vsel %vm213, %v206, %v210
    %v215 = vand.u32 2147483647, %v187
    %vm216 = vcmp.eq.f32.partialorder %v215, 8.507059e+37
    %v217 = vand.u32 %v187, 2147483648
    %v218 = vor.u32 1.1754944e-38, %v217
    %v219 = vsel %vm216, %v218, %v214
    %v220 = vrcp.pop %v190
    %v221 = vmul.f32 %v190, %v220
    %v222 = vsub.f32 1.0, %v221
    %v223 = vmul.f32 %v220, %v222
    %v224 = vadd.f32 %v220, %v223
    %vm225 = vweird.f32 %v190
    %vm226 = vweird.f32 %v220
    %vm227 = vmor %vm225, %vm226
    %v228 = vsel %vm227, %v220, %v224
    %v229 = vand.u32 2147483647, %v190
    %vm230 = vcmp.eq.f32.partialorder %v229, 8.507059e+37
    %v231 = vand.u32 %v190, 2147483648
    %v232 = vor.u32 1.1754944e-38, %v231
    %v233 = vsel %vm230, %v232, %v228
    %v234 = vrcp.pop %v193
    %v235 = vmul.f32 %v193, %v234
    %v236 = vsub.f32 1.0, %v235
    %v237 = vmul.f32 %v234, %v236
    %v238 = vadd.f32 %v234, %v237
    %vm239 = vweird.f32 %v193
    %vm240 = vweird.f32 %v234
    %vm241 = vmor %vm239, %vm240
    %v242 = vsel %vm241, %v234, %v238
    %v243 = vand.u32 2147483647, %v193
    %vm244 = vcmp.eq.f32.partialorder %v243, 8.507059e+37
    %v245 = vand.u32 %v193, 2147483648
    %v246 = vor.u32 1.1754944e-38, %v245
    %v247 = vsel %vm244, %v246, %v242
    %v248 = vrcp.pop %v196
    %v249 = vmul.f32 %v196, %v248
    %v250 = vsub.f32 1.0, %v249
    %v251 = vmul.f32 %v248, %v250
    %v252 = vadd.f32 %v248, %v251
    %vm253 = vweird.f32 %v196
    %vm254 = vweird.f32 %v248
    %vm255 = vmor %vm253, %vm254
    %v256 = vsel %vm255, %v248, %v252
    %v257 = vand.u32 2147483647, %v196
    %vm258 = vcmp.eq.f32.partialorder %v257, 8.507059e+37
    %v259 = vand.u32 %v196, 2147483648
    %v260 = vor.u32 1.1754944e-38, %v259
    %v261 = vsel %vm258, %v260, %v256
    %v262 = vrcp.pop %v199
    %v263 = vmul.f32 %v199, %v262
    %v264 = vsub.f32 1.0, %v263
    %v265 = vmul.f32 %v262, %v264
    %v266 = vadd.f32 %v262, %v265
    %vm267 = vweird.f32 %v199
    %vm268 = vweird.f32 %v262
    %vm269 = vmor %vm267, %vm268
    %v270 = vsel %vm269, %v262, %v266
    %v271 = vand.u32 2147483647, %v199
    %vm272 = vcmp.eq.f32.partialorder %v271, 8.507059e+37
    %v273 = vand.u32 %v199, 2147483648
    %v274 = vor.u32 1.1754944e-38, %v273
    %v275 = vsel %vm272, %v274, %v270
    %v276 = vrcp.pop %v202
    %v277 = vmul.f32 %v202, %v276
    %v278 = vsub.f32 1.0, %v277
    %v279 = vmul.f32 %v276, %v278
    %v280 = vadd.f32 %v276, %v279
    %vm281 = vweird.f32 %v202
    %vm282 = vweird.f32 %v276
    %vm283 = vmor %vm281, %vm282
    %v284 = vsel %vm283, %v276, %v280
    %v285 = vand.u32 2147483647, %v202
    %vm286 = vcmp.eq.f32.partialorder %v285, 8.507059e+37
    %v287 = vand.u32 %v202, 2147483648
    %v288 = vor.u32 1.1754944e-38, %v287
    %v289 = vsel %vm286, %v288, %v284
    %v290 = vrcp.pop %v205
    %v291 = vmul.f32 %v205, %v290
    %v292 = vsub.f32 1.0, %v291
    %v293 = vmul.f32 %v290, %v292
    %v294 = vadd.f32 %v290, %v293
    %vm295 = vweird.f32 %v205
    %vm296 = vweird.f32 %v290
    %vm297 = vmor %vm295, %vm296
    %v298 = vsel %vm297, %v290, %v294
    %v299 = vand.u32 2147483647, %v205
    %vm300 = vcmp.eq.f32.partialorder %v299, 8.507059e+37
    %v301 = vand.u32 %v205, 2147483648
    %v302 = vor.u32 1.1754944e-38, %v301
    %v303 = vsel %vm300, %v302, %v298
    %v304 = vmul.f32 %v166, %v219
    %v305 = vmul.f32 %v169, %v233
    %v306 = vmul.f32 %v172, %v247
    %v307 = vmul.f32 %v175, %v261
    %v308 = vmul.f32 %v178, %v275
    %v309 = vmul.f32 %v181, %v289
    %v310 = vmul.f32 %v184, %v303
    %v318 = vlaneseq
    %v319 = vand.u32 %v318, 127
    %v320 = vperm.slane %v304, %v319
    %v321 = vadd.s32 %v319, 4294967288
    %v322 = vperm.slane %v305, %v321
    %vm323 = vcmask 130112
    %v324 = vsel %vm323, %v322, %v320
    %v325 = vadd.s32 %v319, 4294967280
    %v326 = vperm.slane %v306, %v325
    %vm327 = vcmask 195712
    %v328 = vsel %vm327, %v326, %v324
    %v329 = vadd.s32 %v319, 4294967272
    %v330 = vperm.slane %v307, %v329
    %vm331 = vcmask 261312
    %v332 = vsel %vm331, %v330, %v328
    %v333 = vadd.s32 %v319, 4294967264
    %v334 = vperm.slane %v308, %v333
    %vm335 = vcmask 326912
    %v336 = vsel %vm335, %v334, %v332
    %v337 = vadd.s32 %v319, 4294967256
    %v338 = vperm.slane %v309, %v337
    %vm339 = vcmask 392512
    %v340 = vsel %vm339, %v338, %v336
    %v341 = vadd.s32 %v319, 4294967248
    %v342 = vperm.slane %v310, %v341
    %vm343 = vcmask 458112
    %v344 = vsel %vm343, %v342, %v340
    %vm346 = vcmask 450560
    %347 = vst.msk [vmem:[#allocation6] sm:$0x1] %vm346, %v344
    // Predicated region
    $region22: #{tpu_custom_call.1} parent=1 // pred_check
      _
    $region23: #{tpu_custom_call.1} parent=1 // pred_check_branch
      %349 = sbr.rel (0) target = $region25
    $region24: #{tpu_custom_call.1} parent=1 // pred_region
      %351 = vsyncadd [#allocation5], 0
      %s353 = sshll.u32 [#allocation6], 4
      %s354 = int_to_ptr.vmem [resolvable:$true] %s353
      %s355 = sshll.u32 %s4, 4
      %s356 = int_to_ptr.hbm [resolvable:$true] %s355
      %358 = dma.vmem_to_hbm [thread:$0]  %s354, 16, %s356, [#allocation5]
    $region25: #{tpu_custom_call.1} parent=1 // pred_fallthru
      _
    // Predicated region
    $region26: #{tpu_custom_call.1} parent=1 // pred_check
      _
    $region27: #{tpu_custom_call.1} parent=1 // pred_check_branch
      %360 = sbr.rel (0) target = $region29
    $region28: #{tpu_custom_call.1} parent=1 // pred_region
      %362 = dma.done [#allocation5], 16
    $region29: #{tpu_custom_call.1} parent=1 // pred_fallthru
      _
    %363 = vsyncpa [#allocation4], 1
    %364 = vsyncpa [#allocation5], 1

</llo_original>
